<compile_context>
chip_gen: v5e
topology: v5e:2x2
jax: 0.10.0
libtpu: 0.0.40
codegen_flags: <defaults>
</compile_context>

<pallas_src>
import jax
import jax.numpy as jnp
from jax.experimental import pallas as pl
from jax.experimental.pallas import tpu as pltpu


def _round_up(x, m):
    return ((x + m - 1) // m) * m


# ---------------------------------------------------------------------------
# Kernels
# ---------------------------------------------------------------------------
def _gemm_scale_bias_relu_kernel(a_ref, b_ref, scale_ref, bias_ref, o_ref):
    """Single-K-block path: o = relu((A @ B) * scale + bias), one write per tile.

    a_ref:     (tm, K)  bf16 im2col rows
    b_ref:     (K, tn)  bf16 conv weights
    scale_ref: (1, tn)  f32 BN scale (gamma / sqrt(var + eps))
    bias_ref:  (1, tn)  f32 fused bias ((conv_bias - mean) * scale + beta)
    o_ref:     (tm, tn) bf16 output tile
    """
    acc = jnp.dot(a_ref[...], b_ref[...], preferred_element_type=jnp.float32)
    y = acc * scale_ref[...] + bias_ref[...]
    o_ref[...] = jnp.maximum(y, 0.0).astype(o_ref.dtype)


def _gemm_scale_bias_relu_acc_kernel(a_ref, b_ref, scale_ref, bias_ref,
                                     o_ref, acc_ref):
    """Large-K fallback: accumulate over the K grid axis in a f32 VMEM scratch."""
    @pl.when(pl.program_id(2) == 0)
    def _():
        acc_ref[...] = jnp.zeros_like(acc_ref)

    acc_ref[...] += jnp.dot(a_ref[...], b_ref[...],
                            preferred_element_type=jnp.float32)

    @pl.when(pl.program_id(2) == pl.num_programs(2) - 1)
    def _():
        y = acc_ref[...] * scale_ref[...] + bias_ref[...]
        o_ref[...] = jnp.maximum(y, 0.0).astype(o_ref.dtype)


# ---------------------------------------------------------------------------
# Tile selection + pallas_call driver
# ---------------------------------------------------------------------------
_MAX_SINGLE_K = 2048  # full-K block up to this; beyond, use a K reduction axis


def _choose_tiles(M, K, Cout):
    # Output channels: keep lane-dense stores, never pad beyond one 128-lane
    # tile of waste; allow wide tn (256/512) only when Cout supports it.
    n_pad = _round_up(Cout, 128)
    tn = min(512, n_pad)
    while n_pad % tn:
        tn -= 128

    # Contraction dim.
    if K <= _MAX_SINGLE_K:
        k_pad = _round_up(K, 16)   # bf16 sublane pack; block is full-extent
        tk = k_pad
    else:
        tk = 512
        k_pad = _round_up(K, tk)

    # Row tiles: big for pipelining, but keep >= 2 parallel grid points so
    # both v7x TensorCores get work (no effect on v5e/v6e correctness/perf).
    tm = min(512, _round_up(M, 128))
    while tm > 128 and (-(-M // tm)) * (n_pad // tn) < 2:
        tm //= 2
    m_pad = _round_up(M, tm)
    return tm, tn, tk, m_pad, n_pad, k_pad


def _conv_bn_relu_gemm(a2d, w2d, scale, bias_fused, M, K, Cout, out_dtype):
    tm, tn, tk, M_pad, N_pad, K_pad = _choose_tiles(M, K, Cout)

    a = jnp.pad(a2d, ((0, M_pad - M), (0, K_pad - K)))
    b = jnp.pad(w2d, ((0, K_pad - K), (0, N_pad - Cout)))
    scale2d = jnp.pad(scale.reshape(1, Cout).astype(jnp.float32),
                      ((0, 0), (0, N_pad - Cout)))
    bias2d = jnp.pad(bias_fused.reshape(1, Cout).astype(jnp.float32),
                     ((0, 0), (0, N_pad - Cout)))

    # 48 MiB keeps headroom on v7x (64 MiB/TC); could go higher on v5e/v6e.
    cparams = dict(vmem_limit_bytes=48 * 1024 * 1024)

    if K_pad // tk == 1:
        # Single contraction block: no accumulator, no reduction grid axis.
        out2d = pl.pallas_call(
            _gemm_scale_bias_relu_kernel,
            out_shape=jax.ShapeDtypeStruct((M_pad, N_pad), out_dtype),
            grid_spec=pltpu.PrefetchScalarGridSpec(
                num_scalar_prefetch=0,
                grid=(M_pad // tm, N_pad // tn),
                in_specs=[
                    # v5e knob if A DMA is exposed: pipeline_mode=pl.Buffered(3)
                    pl.BlockSpec((tm, K_pad), lambda i, j: (i, 0)),
                    pl.BlockSpec((K_pad, tn), lambda i, j: (0, j)),
                    pl.BlockSpec((1, tn), lambda i, j: (0, j)),
                    pl.BlockSpec((1, tn), lambda i, j: (0, j)),
                ],
                out_specs=pl.BlockSpec((tm, tn), lambda i, j: (i, j)),
            ),
            compiler_params=pltpu.CompilerParams(
                dimension_semantics=("parallel", "parallel"), **cparams),
        )(a, b, scale2d, bias2d)
    else:
        out2d = pl.pallas_call(
            _gemm_scale_bias_relu_acc_kernel,
            out_shape=jax.ShapeDtypeStruct((M_pad, N_pad), out_dtype),
            grid_spec=pltpu.PrefetchScalarGridSpec(
                num_scalar_prefetch=0,
                grid=(M_pad // tm, N_pad // tn, K_pad // tk),
                in_specs=[
                    pl.BlockSpec((tm, tk), lambda i, j, k: (i, k)),
                    pl.BlockSpec((tk, tn), lambda i, j, k: (k, j)),
                    pl.BlockSpec((1, tn), lambda i, j, k: (0, j)),
                    pl.BlockSpec((1, tn), lambda i, j, k: (0, j)),
                ],
                out_specs=pl.BlockSpec((tm, tn), lambda i, j, k: (i, j)),
                scratch_shapes=[pltpu.VMEM((tm, tn), jnp.float32)],
            ),
            compiler_params=pltpu.CompilerParams(
                dimension_semantics=("parallel", "parallel", "arbitrary"),
                **cparams),
        )(a, b, scale2d, bias2d)

    return out2d[:M, :Cout]


# ---------------------------------------------------------------------------
# Forward passes
# ---------------------------------------------------------------------------
def basic_block_2d_forward_nhwc(x_nhwc, weight_oihw, bias, gamma, beta,
                                running_mean, running_var, eps=1e-5,
                                stride=1, padding=1, out_dtype=jnp.bfloat16):
    """Conv2d + BatchNorm2d (eval) + ReLU.  Native NHWC path."""
    N, H, W, Cin = x_nhwc.shape
    Cout, Cin_w, KH, KW = weight_oihw.shape
    assert Cin == Cin_w

    Ho = (H + 2 * padding - KH) // stride + 1
    Wo = (W + 2 * padding - KW) // stride + 1

    # BN (inference) as an f32 epilogue scale + fused bias.
    scale = (gamma / jnp.sqrt(running_var + eps)).astype(jnp.float32)      # (Cout,)
    bias_fused = ((bias - running_mean) * scale + beta).astype(jnp.float32)

    # im2col in bf16 (layout plumbing only; all FLOPs run in the kernel).
    x = x_nhwc.astype(jnp.bfloat16)
    x_pad = jnp.pad(x, ((0, 0), (padding, padding), (padding, padding), (0, 0)))
    patches = jnp.concatenate(
        [x_pad[:, kh:kh + stride * Ho:stride, kw:kw + stride * Wo:stride, :]
         for kh in range(KH) for kw in range(KW)],
        axis=-1)                                        # (N, Ho, Wo, KH*KW*Cin)

    K = KH * KW * Cin
    M = N * Ho * Wo
    a2d = patches.reshape(M, K)
    # Same (kh, kw, c) flattening order as the patches.
    w2d = jnp.transpose(weight_oihw, (2, 3, 1, 0)).reshape(K, Cout).astype(jnp.bfloat16)

    out2d = _conv_bn_relu_gemm(a2d, w2d, scale, bias_fused, M, K, Cout, out_dtype)
    return out2d.reshape(N, Ho, Wo, Cout)


def basic_block_2d_forward(x_nchw, weight_oihw, bias, gamma, beta,
                           running_mean, running_var, eps=1e-5,
                           stride=1, padding=1, out_dtype=jnp.bfloat16):
    """NCHW wrapper matching the PyTorch module contract.  Prefer the NHWC
    entry point above when composing with neighboring layers (saves two full
    HBM round-trip transposes)."""
    x_nhwc = jnp.transpose(x_nchw, (0, 2, 3, 1))
    y = basic_block_2d_forward_nhwc(x_nhwc, weight_oihw, bias, gamma, beta,
                                    running_mean, running_var, eps=eps,
                                    stride=stride, padding=padding,
                                    out_dtype=out_dtype)
    return jnp.transpose(y, (0, 3, 1, 2))


# ---------------------------------------------------------------------------
# Reference + self-test
# ---------------------------------------------------------------------------
def _reference(x_nchw, weight_oihw, bias, gamma, beta, running_mean,
               running_var, eps=1e-5, stride=1, padding=1):
    y = jax.lax.conv_general_dilated(
        x_nchw, weight_oihw,
        window_strides=(stride, stride),
        padding=[(padding, padding), (padding, padding)],
        dimension_numbers=("NCHW", "OIHW", "NCHW"))
    y = y + bias[None, :, None, None]
    scale = gamma / jnp.sqrt(running_var + eps)
    shift = beta - running_mean * scale
    y = y * scale[None, :, None, None] + shift[None, :, None, None]
    return jnp.maximum(y, 0.0)


if __name__ == "__main__":
    key = jax.random.PRNGKey(0)
    k_x, k_w, k_b, k_g, k_be, k_m, k_v = jax.random.split(key, 7)

    N, Cin, Cout, H, W, KSZ = 2, 4, 8, 16, 16, 3

    x = jax.random.normal(k_x, (N, Cin, H, W), dtype=jnp.float32)
    weight = jax.random.normal(k_w, (Cout, Cin, KSZ, KSZ), dtype=jnp.float32) * 0.1
    bias = jax.random.normal(k_b, (Cout,), dtype=jnp.float32) * 0.1
    gamma = 1.0 + 0.1 * jax.random.normal(k_g, (Cout,), dtype=jnp.float32)
    beta = 0.1 * jax.random.normal(k_be, (Cout,), dtype=jnp.float32)
    running_mean = 0.1 * jax.random.normal(k_m, (Cout,), dtype=jnp.float32)
    running_var = jnp.abs(1.0 + 0.1 * jax.random.normal(k_v, (Cout,), dtype=jnp.float32))

    out = basic_block_2d_forward(x, weight, bias, gamma, beta,
                                 running_mean, running_var)
    out = jax.block_until_ready(out)

    ref = _reference(x, weight, bias, gamma, beta, running_mean, running_var)
    assert out.shape == (N, Cout, H, W)
    # bf16 MXU inputs + bf16 output (f32 accumulate) -> loose tolerance vs f32 ref.
    assert jnp.allclose(out.astype(jnp.float32), ref, atol=4e-2, rtol=4e-2), \
        "mismatch vs reference"

    print("KERNEL_OK")
</pallas_src>

<mosaic_0001>
module attributes {stable_mosaic.version = 11 : i64} {
  func.func @_gemm_scale_bias_relu_kernel(%arg0: i32, %arg1: i32, %arg2: memref<256x48xbf16, #tpu.memory_space<vmem>>, %arg3: memref<48x128xbf16, #tpu.memory_space<vmem>>, %arg4: memref<1x128xf32, #tpu.memory_space<vmem>>, %arg5: memref<1x128xf32, #tpu.memory_space<vmem>>, %arg6: memref<256x128xbf16, #tpu.memory_space<vmem>>) attributes {dimension_semantics = [#tpu.dimension_semantics<parallel>, #tpu.dimension_semantics<parallel>], iteration_bounds = array<i64: 2, 1>, scalar_prefetch = 0 : i64, scratch_operands = 0 : i64, tpu.core_type = #tpu.core_type<tc>, window_params = [{transform_indices = @transform_0, window_bounds = array<i64: 256, 48>}, {transform_indices = @transform_1, window_bounds = array<i64: 48, 128>}, {transform_indices = @transform_2, window_bounds = array<i64: 1, 128>}, {transform_indices = @transform_3, window_bounds = array<i64: 1, 128>}, {transform_indices = @transform_4, window_bounds = array<i64: 256, 128>}]} {
    %c0 = arith.constant 0 : index
    %c0_0 = arith.constant 0 : index
    %0 = vector.load %arg2[%c0, %c0_0] : memref<256x48xbf16, #tpu.memory_space<vmem>>, vector<256x48xbf16>
    %c0_1 = arith.constant 0 : index
    %c0_2 = arith.constant 0 : index
    %1 = vector.load %arg3[%c0_1, %c0_2] : memref<48x128xbf16, #tpu.memory_space<vmem>>, vector<48x128xbf16>
    %cst = arith.constant dense<0.000000e+00> : vector<256x128xf32>
    %2 = tpu.matmul %0, %1, %cst {dimension_numbers = #tpu.dot_dimension_numbers<[1], [0], [0], [1], [0, 0, 1, 1], [], []>} : vector<256x48xbf16>, vector<48x128xbf16>, vector<256x128xf32> -> vector<256x128xf32>
    %c0_3 = arith.constant 0 : index
    %c0_4 = arith.constant 0 : index
    %3 = vector.load %arg4[%c0_3, %c0_4] : memref<1x128xf32, #tpu.memory_space<vmem>>, vector<1x128xf32>
    %4 = vector.broadcast %3 : vector<1x128xf32> to vector<256x128xf32>
    %5 = arith.mulf %2, %4 : vector<256x128xf32>
    %c0_5 = arith.constant 0 : index
    %c0_6 = arith.constant 0 : index
    %6 = vector.load %arg5[%c0_5, %c0_6] : memref<1x128xf32, #tpu.memory_space<vmem>>, vector<1x128xf32>
    %7 = vector.broadcast %6 : vector<1x128xf32> to vector<256x128xf32>
    %8 = arith.addf %5, %7 : vector<256x128xf32>
    %cst_7 = arith.constant 0.000000e+00 : f32
    %9 = vector.broadcast %cst_7 : f32 to vector<256x128xf32>
    %10 = arith.maximumf %8, %9 : vector<256x128xf32>
    %11 = arith.truncf %10 : vector<256x128xf32> to vector<256x128xbf16>
    %c0_8 = arith.constant 0 : index
    %c0_9 = arith.constant 0 : index
    %12 = vector.load %arg6[%c0_8, %c0_9] : memref<256x128xbf16, #tpu.memory_space<vmem>>, vector<256x128xbf16>
    tpu.vector_store %arg6[%c0_8, %c0_9], %11 {strides = array<i32>} : memref<256x128xbf16, #tpu.memory_space<vmem>>, vector<256x128xbf16>,
    return
  }
  func.func @transform_0(%arg0: i32, %arg1: i32) -> (i32, i32) {
    %c0_i32 = arith.constant 0 : i32
    %c0_i32_0 = arith.constant 0 : i32
    return %arg0, %c0_i32 : i32, i32
  }
  func.func @transform_1(%arg0: i32, %arg1: i32) -> (i32, i32) {
    %c0_i32 = arith.constant 0 : i32
    %c0_i32_0 = arith.constant 0 : i32
    return %c0_i32, %arg1 : i32, i32
  }
  func.func @transform_2(%arg0: i32, %arg1: i32) -> (i32, i32) {
    %c0_i32 = arith.constant 0 : i32
    %c0_i32_0 = arith.constant 0 : i32
    return %c0_i32, %arg1 : i32, i32
  }
  func.func @transform_3(%arg0: i32, %arg1: i32) -> (i32, i32) {
    %c0_i32 = arith.constant 0 : i32
    %c0_i32_0 = arith.constant 0 : i32
    return %c0_i32, %arg1 : i32, i32
  }
  func.func @transform_4(%arg0: i32, %arg1: i32) -> (i32, i32) {
    %c0_i32 = arith.constant 0 : i32
    return %arg0, %arg1 : i32, i32
  }
}

</mosaic_0001>

<llo_original>
// kernel: tpu_custom_call.1
$region0: #{tpu_custom_call.1}
  #allocation0 [shape = 'u32[]', space=smem, size = 0x4, offset = 0x4, fixed_abs, tag = 'smem constant byte address 0x4 - core index']
  #allocation1 [shape = 'u32[72,128]{1,0:T(1,128)}', space=vmem, size = 0x9000, scoped, tag = 'internal scratch']
  %s0 = inlined_call_operand.vmem [shape: bf16[512,48], index: 0, kind: input, shape index: {}]
  %s1 = inlined_call_operand.vmem [shape: bf16[48,128], index: 1, kind: input, shape index: {}]
  %s2 = inlined_call_operand.vmem [shape: f32[1,128], index: 2, kind: input, shape index: {}]
  %s3 = inlined_call_operand.vmem [shape: f32[1,128], index: 3, kind: input, shape index: {}]
  %s4 = inlined_call_operand.hbm [shape: bf16[512,128], index: 4, kind: output, shape index: {}]
  %s5 = sld [smem:[#allocation0]]
  $region49: #{tpu_custom_call.1} parent=0
    _
  %s7 = ssub.s32 1, %s5
  %s8 = scalar_select 0, %s7, %s5
  $region1: #{tpu_custom_call.1} parent=0
    #allocation2 [shape = 'u8[131072]{0}', space=vmem, size = 0x20000, scoped, tag = 'output window, operand 0']
    #allocation3 [shape = 's32[2]{0}', space=sflag, size = 0x8, scoped, tag = 'scoped memory for tpu_custom_call.1']
    %9 = vsyncpa [#allocation3], 0
    %s10 = scalar_lea.sflag [#allocation3], 1
    %11 = vsyncpa %s10, 0
    loop: start=0, step=1, limit=4
    $region2: #{tpu_custom_call.1} parent=1 // loop_pre_header
      _
    $region3: #{tpu_custom_call.1} parent=1 // loop_header
      %s13 = sphi 0, %s17
      %p14 = scmp.ge.s32.totalorder %s13, 4
      %s20 = sphi 0, %s32
      %s21 = sphi 0, %s28
      %s22 = sphi 0, %s20
      %s23 = sphi 0, %s21
      %s24 = sphi 0, %s22
      %s25 = sphi 0, %s23
      %s35 = sphi 0, %s37
      %s38 = sphi 0, %s35
      %s39 = sphi 0, %s38
      %s55 = sphi 0, %s39
      %s61 = sphi 0, %s63
      %s64 = sphi 0, %s61
      %s65 = sphi 0, %s64
      %s81 = sphi 0, %s65
      %s87 = sphi 0, %s89
      %s90 = sphi 0, %s87
      %s91 = sphi 0, %s90
      %s107 = sphi 0, %s91
      %s113 = sphi 0, %s115
      %s116 = sphi 0, %s113
      %s117 = sphi 0, %s116
      %s133 = sphi 0, %s117
      %s141 = sphi 0, %s143
      %s144 = sphi 0, %s141
      %s145 = sphi 0, %s144
      %s161 = sphi 0, %s145
    $region4: #{tpu_custom_call.1} parent=1 // loop_header_branch
      %16 = sbr.rel (%p14) target = $region8
    $region5: #{tpu_custom_call.1} parent=1 // loop_body
      %s18 = ssub.s32 %s13, 1
      %s19 = ssub.s32 %s13, 2
      %s26 = sadd.s32 1, %s21
      %p27 = scmp.ge.s32.totalorder %s26, 1
      %s28 = scalar_select %p27, 0, %s26
      %s29 = sadd.s32 1, %s20
      %s30 = scalar_select %p27, %s29, %s20
      %p31 = scmp.ge.s32.totalorder %s30, 2
      %s32 = scalar_select %p31, 0, %s30
      %s33 = ssub.s32 %s20, %s32
      %p34 = scmp.eq.s32.totalorder %s33, 0
      %s36 = sadd.s32 %s35, 1
      %s37 = scalar_select %p34, %s35, %s36
      %p40 = pneg %p34
      %p41 = scmp.eq.s32.totalorder %s13, 1
      %p42 = por %p40, %p41
      %p43 = scmp.ne.s32.totalorder %s35, %s38
      %p44 = scmp.eq.s32.totalorder %s13, 0
      %p45 = por %p43, %p44
      %p46 = scmp.ne.s32.totalorder %s35, %s38
      %p47 = scmp.eq.s32.totalorder %s18, 1
      %p48 = por %p46, %p47
      %p49 = scmp.ne.s32.totalorder %s38, %s39
      %p50 = scmp.eq.s32.totalorder %s18, 0
      %p51 = por %p49, %p50
      %p52 = scmp.ne.s32.totalorder %s38, %s39
      %p53 = scmp.eq.s32.totalorder %s19, 1
      %p54 = por %p52, %p53
      %p56 = scmp.ne.s32.totalorder %s39, %s55
      %p57 = scmp.eq.s32.totalorder %s19, 0
      %p58 = por %p56, %p57
      %s59 = ssub.s32 %s21, %s28
      %p60 = scmp.eq.s32.totalorder %s59, 0
      %s62 = sadd.s32 %s61, 1
      %s63 = scalar_select %p60, %s61, %s62
      %p66 = pneg %p60
      %p67 = scmp.eq.s32.totalorder %s13, 1
      %p68 = por %p66, %p67
      %p69 = scmp.ne.s32.totalorder %s61, %s64
      %p70 = scmp.eq.s32.totalorder %s13, 0
      %p71 = por %p69, %p70
      %p72 = scmp.ne.s32.totalorder %s61, %s64
      %p73 = scmp.eq.s32.totalorder %s18, 1
      %p74 = por %p72, %p73
      %p75 = scmp.ne.s32.totalorder %s64, %s65
      %p76 = scmp.eq.s32.totalorder %s18, 0
      %p77 = por %p75, %p76
      %p78 = scmp.ne.s32.totalorder %s64, %s65
      %p79 = scmp.eq.s32.totalorder %s19, 1
      %p80 = por %p78, %p79
      %p82 = scmp.ne.s32.totalorder %s65, %s81
      %p83 = scmp.eq.s32.totalorder %s19, 0
      %p84 = por %p82, %p83
      %s85 = ssub.s32 %s21, %s28
      %p86 = scmp.eq.s32.totalorder %s85, 0
      %s88 = sadd.s32 %s87, 1
      %s89 = scalar_select %p86, %s87, %s88
      %p92 = pneg %p86
      %p93 = scmp.eq.s32.totalorder %s13, 1
      %p94 = por %p92, %p93
      %p95 = scmp.ne.s32.totalorder %s87, %s90
      %p96 = scmp.eq.s32.totalorder %s13, 0
      %p97 = por %p95, %p96
      %p98 = scmp.ne.s32.totalorder %s87, %s90
      %p99 = scmp.eq.s32.totalorder %s18, 1
      %p100 = por %p98, %p99
      %p101 = scmp.ne.s32.totalorder %s90, %s91
      %p102 = scmp.eq.s32.totalorder %s18, 0
      %p103 = por %p101, %p102
      %p104 = scmp.ne.s32.totalorder %s90, %s91
      %p105 = scmp.eq.s32.totalorder %s19, 1
      %p106 = por %p104, %p105
      %p108 = scmp.ne.s32.totalorder %s91, %s107
      %p109 = scmp.eq.s32.totalorder %s19, 0
      %p110 = por %p108, %p109
      %s111 = ssub.s32 %s21, %s28
      %p112 = scmp.eq.s32.totalorder %s111, 0
      %s114 = sadd.s32 %s113, 1
      %s115 = scalar_select %p112, %s113, %s114
      %p118 = pneg %p112
      %p119 = scmp.eq.s32.totalorder %s13, 1
      %p120 = por %p118, %p119
      %p121 = scmp.ne.s32.totalorder %s113, %s116
      %p122 = scmp.eq.s32.totalorder %s13, 0
      %p123 = por %p121, %p122
      %p124 = scmp.ne.s32.totalorder %s113, %s116
      %p125 = scmp.eq.s32.totalorder %s18, 1
      %p126 = por %p124, %p125
      %p127 = scmp.ne.s32.totalorder %s116, %s117
      %p128 = scmp.eq.s32.totalorder %s18, 0
      %p129 = por %p127, %p128
      %p130 = scmp.ne.s32.totalorder %s116, %s117
      %p131 = scmp.eq.s32.totalorder %s19, 1
      %p132 = por %p130, %p131
      %p134 = scmp.ne.s32.totalorder %s117, %s133
      %p135 = scmp.eq.s32.totalorder %s19, 0
      %p136 = por %p134, %p135
      %s137 = ssub.s32 %s20, %s32
      %s138 = ssub.s32 %s21, %s28
      %s139 = sor.u32 %s137, %s138
      %p140 = scmp.eq.s32.totalorder %s139, 0
      %s142 = sadd.s32 %s141, 1
      %s143 = scalar_select %p140, %s141, %s142
      %p146 = pneg %p140
      %p147 = scmp.eq.s32.totalorder %s13, 1
      %p148 = por %p146, %p147
      %p149 = scmp.ne.s32.totalorder %s141, %s144
      %p150 = scmp.eq.s32.totalorder %s13, 0
      %p151 = por %p149, %p150
      %p152 = scmp.ne.s32.totalorder %s141, %s144
      %p153 = scmp.eq.s32.totalorder %s18, 1
      %p154 = por %p152, %p153
      %p155 = scmp.ne.s32.totalorder %s144, %s145
      %p156 = scmp.eq.s32.totalorder %s18, 0
      %p157 = por %p155, %p156
      %p158 = scmp.ne.s32.totalorder %s144, %s145
      %p159 = scmp.eq.s32.totalorder %s19, 1
      %p160 = por %p158, %p159
      %p162 = scmp.ne.s32.totalorder %s145, %s161
      %p163 = scmp.eq.s32.totalorder %s19, 0
      %p164 = por %p162, %p163
      %p165 = scmp.le.s32.totalorder 1, %s13
      %p166 = scmp.lt.s32.totalorder %s13, 3
      %p167 = pnand %p165, %p166
      %p168 = pneg %p167
      // Predicated region
      $region9: #{tpu_custom_call.1} parent=5 // pred_check
        _
      $region10: #{tpu_custom_call.1} parent=5 // pred_check_branch
        %170 = sbr.rel (%p167) target = $region12
      $region11: #{tpu_custom_call.1} parent=5 // pred_region
        %s171 = ssub.s32 %s13, 1
        // Predicated region
        $region13: #{tpu_custom_call.1} parent=11 // pred_check
          %p172 = pneg %p77
        $region14: #{tpu_custom_call.1} parent=11 // pred_check_branch
          %174 = sbr.rel (%p172) target = $region16
        $region15: #{tpu_custom_call.1} parent=11 // pred_region
          %p175 = scmp.lt.s32.totalorder %s23, 0
          %s176 = scalar_select %p175, %s23, 0
          %s177 = smul.addr %s176, 4
          %s178 = scalar_lea.vmem %s1, %s177
        $region16: #{tpu_custom_call.1} parent=11 // pred_fallthru
          _
        // Predicated region
        $region17: #{tpu_custom_call.1} parent=11 // pred_check
          %p179 = pneg %p103
        $region18: #{tpu_custom_call.1} parent=11 // pred_check_branch
          %181 = sbr.rel (%p179) target = $region20
        $region19: #{tpu_custom_call.1} parent=11 // pred_region
          %p182 = scmp.lt.s32.totalorder %s23, 0
          %s183 = scalar_select %p182, %s23, 0
          %s184 = scalar_lea.vmem %s2, %s183
        $region20: #{tpu_custom_call.1} parent=11 // pred_fallthru
          _
        // Predicated region
        $region21: #{tpu_custom_call.1} parent=11 // pred_check
          %p185 = pneg %p129
        $region22: #{tpu_custom_call.1} parent=11 // pred_check_branch
          %187 = sbr.rel (%p185) target = $region24
        $region23: #{tpu_custom_call.1} parent=11 // pred_region
          %p188 = scmp.lt.s32.totalorder %s23, 0
          %s189 = scalar_select %p188, %s23, 0
          %s190 = scalar_lea.vmem %s3, %s189
        $region24: #{tpu_custom_call.1} parent=11 // pred_fallthru
          _
      $region12: #{tpu_custom_call.1} parent=5 // pred_fallthru
        _
      %p191 = scmp.lt.s32.totalorder %s13, 2
      // Predicated region
      $region25: #{tpu_custom_call.1} parent=5 // pred_check
        %p192 = pneg %p191
      $region26: #{tpu_custom_call.1} parent=5 // pred_check_branch
        %194 = sbr.rel (%p192) target = $region28
      $region27: #{tpu_custom_call.1} parent=5 // pred_region
        // Predicated region
        $region29: #{tpu_custom_call.1} parent=27 // pred_check
          %p195 = pneg %p45
        $region30: #{tpu_custom_call.1} parent=27 // pred_check_branch
          %197 = sbr.rel (%p195) target = $region32
        $region31: #{tpu_custom_call.1} parent=27 // pred_region
          %s198 = smul.u32 32, %s20
          %p199 = scmp.lt.s32.totalorder %s198, 63
          %s200 = scalar_select %p199, %s198, 63
          %s201 = smul.addr %s200, 4
          %s202 = scalar_lea.vmem %s0, %s201
          %s203 = smul.u32 32, %s20
        $region32: #{tpu_custom_call.1} parent=27 // pred_fallthru
          _
      $region28: #{tpu_custom_call.1} parent=5 // pred_fallthru
        _
      %p204 = scmp.le.s32.totalorder 1, %s13
      %p205 = scmp.lt.s32.totalorder %s13, 3
      %p206 = pnand %p204, %p205
      %p207 = pneg %p206
      // Predicated region
      $region33: #{tpu_custom_call.1} parent=5 // pred_check
        _
      $region34: #{tpu_custom_call.1} parent=5 // pred_check_branch
        %209 = sbr.rel (%p206) target = $region36
      $region35: #{tpu_custom_call.1} parent=5 // pred_region
        %s210 = ssub.s32 %s13, 1
        %s211 = smul.u32 32, %s22
        %p212 = scmp.lt.s32.totalorder %s211, 63
        %s213 = scalar_select %p212, %s211, 63
        %s214 = smul.addr %s213, 4
        %s215 = scalar_lea.vmem %s0, %s214
        %p216 = pneg %p51
        %p217 = pneg %p48
        %p218 = scmp.lt.s32.totalorder %s23, 0
        %s219 = scalar_select %p218, %s23, 0
        %s220 = smul.addr %s219, 4
        %s221 = scalar_lea.vmem %s1, %s220
        %p222 = pneg %p77
        %p223 = pneg %p74
        %p224 = scmp.lt.s32.totalorder %s23, 0
        %s225 = scalar_select %p224, %s23, 0
        %s226 = scalar_lea.vmem %s2, %s225
        %p227 = pneg %p103
        %p228 = pneg %p100
        %p229 = scmp.lt.s32.totalorder %s23, 0
        %s230 = scalar_select %p229, %s23, 0
        %s231 = scalar_lea.vmem %s3, %s230
        %p232 = pneg %p129
        %p233 = pneg %p126
        %p234 = pneg %p157
        %p235 = pneg %p154
        %s236 = sand.u32 %s144, 1
        %s237 = scalar_lea.sflag [#allocation3], %s236
        %s238 = sand.u32 %s144, 1
        %s239 = smul.addr %s238, 128
        %s240 = scalar_lea.vmem [#allocation2], %s239
        %s241 = smul.u32 32, %s22
        %p242 = scmp.lt.s32.totalorder %s241, 63
        %s243 = scalar_select %p242, %s241, 63
        %s244 = smul.addr %s243, 4
        %s245 = scalar_lea.vmem %s0, %s244
        %s246 = smul.u32 32, %s22
        %p247 = scmp.lt.s32.totalorder %s23, 0
        %s248 = scalar_select %p247, %s23, 0
        %s249 = smul.addr %s248, 4
        %s250 = scalar_lea.vmem %s1, %s249
        %p251 = scmp.lt.s32.totalorder %s23, 0
        %s252 = scalar_select %p251, %s23, 0
        %s253 = scalar_lea.vmem %s2, %s252
        %p254 = scmp.lt.s32.totalorder %s23, 0
        %s255 = scalar_select %p254, %s23, 0
        %s256 = scalar_lea.vmem %s3, %s255
        %s257 = smul.u32 32, %s22
        %v259 = vld [vmem:[%s245] sm:$0xf]
        %v260 = vld [vmem:[%s245 + $0x4] sm:$0xf]
        %v261 = vld [vmem:[%s245 + $0x8] sm:$0xf]
        %v262 = vld [vmem:[%s245 + $0xc] sm:$0xf]
        %v263 = vld [vmem:[%s245 + $0x10] sm:$0xf]
        %v264 = vld [vmem:[%s245 + $0x14] sm:$0xf]
        %v265 = vld [vmem:[%s245 + $0x18] sm:$0xf]
        %v266 = vld [vmem:[%s245 + $0x1c] sm:$0xf]
        %v267 = vld [vmem:[%s245 + $0x20] sm:$0xf]
        %v268 = vld [vmem:[%s245 + $0x24] sm:$0xf]
        %v269 = vld [vmem:[%s245 + $0x28] sm:$0xf]
        %v270 = vld [vmem:[%s245 + $0x2c] sm:$0xf]
        %v271 = vld [vmem:[%s245 + $0x30] sm:$0xf]
        %v272 = vld [vmem:[%s245 + $0x34] sm:$0xf]
        %v273 = vld [vmem:[%s245 + $0x38] sm:$0xf]
        %v274 = vld [vmem:[%s245 + $0x3c] sm:$0xf]
        %v275 = vld [vmem:[%s245 + $0x40] sm:$0xf]
        %v276 = vld [vmem:[%s245 + $0x44] sm:$0xf]
        %v277 = vld [vmem:[%s245 + $0x48] sm:$0xf]
        %v278 = vld [vmem:[%s245 + $0x4c] sm:$0xf]
        %v279 = vld [vmem:[%s245 + $0x50] sm:$0xf]
        %v280 = vld [vmem:[%s245 + $0x54] sm:$0xf]
        %v281 = vld [vmem:[%s245 + $0x58] sm:$0xf]
        %v282 = vld [vmem:[%s245 + $0x5c] sm:$0xf]
        %v283 = vld [vmem:[%s245 + $0x60] sm:$0xf]
        %v284 = vld [vmem:[%s245 + $0x64] sm:$0xf]
        %v285 = vld [vmem:[%s245 + $0x68] sm:$0xf]
        %v286 = vld [vmem:[%s245 + $0x6c] sm:$0xf]
        %v287 = vld [vmem:[%s245 + $0x70] sm:$0xf]
        %v288 = vld [vmem:[%s245 + $0x74] sm:$0xf]
        %v289 = vld [vmem:[%s245 + $0x78] sm:$0xf]
        %v290 = vld [vmem:[%s245 + $0x7c] sm:$0xf]
        %v291 = vld [vmem:[%s250] sm:$0xf]
        %v292 = vld [vmem:[%s250 + $0x4] sm:$0xf]
        %v293 = vld [vmem:[%s250 + $0x8] sm:$0xf]
        %v294 = vld [vmem:[%s250 + $0xc] sm:$0xf]
        %v295 = vld [vmem:[%s250 + $0x10] sm:$0xf]
        %v296 = vld [vmem:[%s250 + $0x14] sm:$0xf]
        %v329 = vunpack.c.l.b16 %v259
        %v330 = vunpack.c.l.b16 %v260
        %v331 = vunpack.c.l.b16 %v261
        %v332 = vunpack.c.l.b16 %v262
        %v333 = vunpack.c.l.b16 %v263
        %v334 = vunpack.c.l.b16 %v264
        %v335 = vunpack.c.l.b16 %v265
        %v336 = vunpack.c.l.b16 %v266
        %v337 = vunpack.c.l.b16 %v267
        %v338 = vunpack.c.l.b16 %v268
        %v339 = vunpack.c.l.b16 %v269
        %v340 = vunpack.c.l.b16 %v270
        %v341 = vunpack.c.l.b16 %v271
        %v342 = vunpack.c.l.b16 %v272
        %v343 = vunpack.c.l.b16 %v273
        %v344 = vunpack.c.l.b16 %v274
        %v345 = vunpack.c.l.b16 %v275
        %v346 = vunpack.c.l.b16 %v276
        %v347 = vunpack.c.l.b16 %v277
        %v348 = vunpack.c.l.b16 %v278
        %v349 = vunpack.c.l.b16 %v279
        %v350 = vunpack.c.l.b16 %v280
        %v351 = vunpack.c.l.b16 %v281
        %v352 = vunpack.c.l.b16 %v282
        %v353 = vunpack.c.l.b16 %v283
        %v354 = vunpack.c.l.b16 %v284
        %v355 = vunpack.c.l.b16 %v285
        %v356 = vunpack.c.l.b16 %v286
        %v357 = vunpack.c.l.b16 %v287
        %v358 = vunpack.c.l.b16 %v288
        %v359 = vunpack.c.l.b16 %v289
        %v360 = vunpack.c.l.b16 %v290
        %v361 = vpack.c.b16 %v330, %v329
        %v362 = vpack.c.b16 %v332, %v331
        %v363 = vpack.c.b16 %v334, %v333
        %v364 = vpack.c.b16 %v336, %v335
        %v365 = vpack.c.b16 %v338, %v337
        %v366 = vpack.c.b16 %v340, %v339
        %v367 = vpack.c.b16 %v342, %v341
        %v368 = vpack.c.b16 %v344, %v343
        %v369 = vpack.c.b16 %v346, %v345
        %v370 = vpack.c.b16 %v348, %v347
        %v371 = vpack.c.b16 %v350, %v349
        %v372 = vpack.c.b16 %v352, %v351
        %v373 = vpack.c.b16 %v354, %v353
        %v374 = vpack.c.b16 %v356, %v355
        %v375 = vpack.c.b16 %v358, %v357
        %v376 = vpack.c.b16 %v360, %v359
        %v383 = vunpack.c.l.b16 %v291
        %v384 = vunpack.c.l.b16 %v292
        %v385 = vunpack.c.l.b16 %v293
        %v386 = vunpack.c.l.b16 %v294
        %v387 = vunpack.c.l.b16 %v295
        %v388 = vunpack.c.l.b16 %v296
        %v389 = vpack.c.b16 %v384, %v383
        %v390 = vpack.c.b16 %v386, %v385
        %v391 = vpack.c.b16 %v388, %v387
        %vm395 = vcmask 392192
        %v397 = vsel %vm395, %v361, 0
        %v400 = vsel %vm395, %v362, 0
        %v403 = vsel %vm395, %v363, 0
        %v406 = vsel %vm395, %v364, 0
        %v409 = vsel %vm395, %v365, 0
        %v412 = vsel %vm395, %v366, 0
        %v415 = vsel %vm395, %v367, 0
        %v418 = vsel %vm395, %v368, 0
        %v421 = vsel %vm395, %v369, 0
        %v424 = vsel %vm395, %v370, 0
        %v427 = vsel %vm395, %v371, 0
        %v430 = vsel %vm395, %v372, 0
        %v433 = vsel %vm395, %v373, 0
        %v436 = vsel %vm395, %v374, 0
        %v439 = vsel %vm395, %v375, 0
        %v442 = vsel %vm395, %v376, 0
        %444 = vmatpush.bf16.msra.mxu0 0
        %445 = vmatpush.bf16.msra.mxu0 0
        %446 = vmatpush.bf16.msra.mxu0 0
        %447 = vmatpush.bf16.msra.mxu0 0
        %448 = vmatpush.bf16.msra.mxu0 0
        %449 = vmatpush.bf16.msra.mxu0 %v391
        %450 = vmatpush.bf16.msra.mxu0 %v390
        %451 = vmatpush.bf16.msra.mxu0 %v389
        %452 = vmatmul.bf16.gmra.mxu0 %v397
        %v453 = vpop.f32.mrf.mxu0
        %v454 = vadd.f32 0.0, %v453
        %v455 = vpop.f32.mrf.mxu0
        %v456 = vadd.f32 0.0, %v455
        %457 = vmatmul.bf16.gmra.mxu0 %v400
        %v458 = vpop.f32.mrf.mxu0
        %v459 = vadd.f32 0.0, %v458
        %v460 = vpop.f32.mrf.mxu0
        %v461 = vadd.f32 0.0, %v460
        %462 = vmatmul.bf16.gmra.mxu0 %v403
        %v463 = vpop.f32.mrf.mxu0
        %v464 = vadd.f32 0.0, %v463
        %v465 = vpop.f32.mrf.mxu0
        %v466 = vadd.f32 0.0, %v465
        %467 = vmatmul.bf16.gmra.mxu0 %v406
        %v468 = vpop.f32.mrf.mxu0
        %v469 = vadd.f32 0.0, %v468
        %v470 = vpop.f32.mrf.mxu0
        %v471 = vadd.f32 0.0, %v470
        %472 = vmatmul.bf16.gmra.mxu0 %v409
        %v473 = vpop.f32.mrf.mxu0
        %v474 = vadd.f32 0.0, %v473
        %v475 = vpop.f32.mrf.mxu0
        %v476 = vadd.f32 0.0, %v475
        %477 = vmatmul.bf16.gmra.mxu0 %v412
        %v478 = vpop.f32.mrf.mxu0
        %v479 = vadd.f32 0.0, %v478
        %v480 = vpop.f32.mrf.mxu0
        %v481 = vadd.f32 0.0, %v480
        %482 = vmatmul.bf16.gmra.mxu0 %v415
        %v483 = vpop.f32.mrf.mxu0
        %v484 = vadd.f32 0.0, %v483
        %v485 = vpop.f32.mrf.mxu0
        %v486 = vadd.f32 0.0, %v485
        %487 = vmatmul.bf16.gmra.mxu0 %v418
        %v488 = vpop.f32.mrf.mxu0
        %v489 = vadd.f32 0.0, %v488
        %v490 = vpop.f32.mrf.mxu0
        %v491 = vadd.f32 0.0, %v490
        %492 = vmatmul.bf16.gmra.mxu0 %v421
        %v493 = vpop.f32.mrf.mxu0
        %v494 = vadd.f32 0.0, %v493
        %v495 = vpop.f32.mrf.mxu0
        %v496 = vadd.f32 0.0, %v495
        %497 = vmatmul.bf16.gmra.mxu0 %v424
        %v498 = vpop.f32.mrf.mxu0
        %v499 = vadd.f32 0.0, %v498
        %v500 = vpop.f32.mrf.mxu0
        %v501 = vadd.f32 0.0, %v500
        %502 = vmatmul.bf16.gmra.mxu0 %v427
        %v503 = vpop.f32.mrf.mxu0
        %v504 = vadd.f32 0.0, %v503
        %v505 = vpop.f32.mrf.mxu0
        %v506 = vadd.f32 0.0, %v505
        %507 = vmatmul.bf16.gmra.mxu0 %v430
        %v508 = vpop.f32.mrf.mxu0
        %v509 = vadd.f32 0.0, %v508
        %v510 = vpop.f32.mrf.mxu0
        %v511 = vadd.f32 0.0, %v510
        %512 = vmatmul.bf16.gmra.mxu0 %v433
        %v513 = vpop.f32.mrf.mxu0
        %v514 = vadd.f32 0.0, %v513
        %v515 = vpop.f32.mrf.mxu0
        %v516 = vadd.f32 0.0, %v515
        %517 = vmatmul.bf16.gmra.mxu0 %v436
        %v518 = vpop.f32.mrf.mxu0
        %v519 = vadd.f32 0.0, %v518
        %v520 = vpop.f32.mrf.mxu0
        %v521 = vadd.f32 0.0, %v520
        %522 = vmatmul.bf16.gmra.mxu0 %v439
        %v523 = vpop.f32.mrf.mxu0
        %v524 = vadd.f32 0.0, %v523
        %v525 = vpop.f32.mrf.mxu0
        %v526 = vadd.f32 0.0, %v525
        %527 = vmatmul.bf16.gmra.mxu0 %v442
        %v528 = vpop.f32.mrf.mxu0
        %v529 = vadd.f32 0.0, %v528
        %v530 = vpop.f32.mrf.mxu0
        %v531 = vadd.f32 0.0, %v530
        %532 = vdwg.mxu0
        %v533 = vld [vmem:[%s253] sm:$0x1]
        %v535 = vperm.slane %v533, 0
        %v537 = vmul.f32 %v454, %v535
        %v538 = vmul.f32 %v456, %v535
        %v539 = vmul.f32 %v459, %v535
        %v540 = vmul.f32 %v461, %v535
        %v541 = vmul.f32 %v464, %v535
        %v542 = vmul.f32 %v466, %v535
        %v543 = vmul.f32 %v469, %v535
        %v544 = vmul.f32 %v471, %v535
        %v545 = vmul.f32 %v474, %v535
        %v546 = vmul.f32 %v476, %v535
        %v547 = vmul.f32 %v479, %v535
        %v548 = vmul.f32 %v481, %v535
        %v549 = vmul.f32 %v484, %v535
        %v550 = vmul.f32 %v486, %v535
        %v551 = vmul.f32 %v489, %v535
        %v552 = vmul.f32 %v491, %v535
        %v553 = vmul.f32 %v494, %v535
        %v554 = vmul.f32 %v496, %v535
        %v555 = vmul.f32 %v499, %v535
        %v556 = vmul.f32 %v501, %v535
        %v557 = vmul.f32 %v504, %v535
        %v558 = vmul.f32 %v506, %v535
        %v559 = vmul.f32 %v509, %v535
        %v560 = vmul.f32 %v511, %v535
        %v561 = vmul.f32 %v514, %v535
        %v562 = vmul.f32 %v516, %v535
        %v563 = vmul.f32 %v519, %v535
        %v564 = vmul.f32 %v521, %v535
        %v565 = vmul.f32 %v524, %v535
        %v566 = vmul.f32 %v526, %v535
        %v567 = vmul.f32 %v529, %v535
        %v568 = vmul.f32 %v531, %v535
        %v569 = vld [vmem:[%s256] sm:$0x1]
        %v571 = vperm.slane %v569, 0
        %v573 = vadd.f32 %v537, %v571
        %v574 = vadd.f32 %v538, %v571
        %v575 = vadd.f32 %v539, %v571
        %v576 = vadd.f32 %v540, %v571
        %v577 = vadd.f32 %v541, %v571
        %v578 = vadd.f32 %v542, %v571
        %v579 = vadd.f32 %v543, %v571
        %v580 = vadd.f32 %v544, %v571
        %v581 = vadd.f32 %v545, %v571
        %v582 = vadd.f32 %v546, %v571
        %v583 = vadd.f32 %v547, %v571
        %v584 = vadd.f32 %v548, %v571
        %v585 = vadd.f32 %v549, %v571
        %v586 = vadd.f32 %v550, %v571
        %v587 = vadd.f32 %v551, %v571
        %v588 = vadd.f32 %v552, %v571
        %v589 = vadd.f32 %v553, %v571
        %v590 = vadd.f32 %v554, %v571
        %v591 = vadd.f32 %v555, %v571
        %v592 = vadd.f32 %v556, %v571
        %v593 = vadd.f32 %v557, %v571
        %v594 = vadd.f32 %v558, %v571
        %v595 = vadd.f32 %v559, %v571
        %v596 = vadd.f32 %v560, %v571
        %v597 = vadd.f32 %v561, %v571
        %v598 = vadd.f32 %v562, %v571
        %v599 = vadd.f32 %v563, %v571
        %v600 = vadd.f32 %v564, %v571
        %v601 = vadd.f32 %v565, %v571
        %v602 = vadd.f32 %v566, %v571
        %v603 = vadd.f32 %v567, %v571
        %v604 = vadd.f32 %v568, %v571
        %v605 = vmax.f32 %v573, 0.0
        %v606 = vmax.f32 %v574, 0.0
        %v607 = vmax.f32 %v575, 0.0
        %v608 = vmax.f32 %v576, 0.0
        %v609 = vmax.f32 %v577, 0.0
        %v610 = vmax.f32 %v578, 0.0
        %v611 = vmax.f32 %v579, 0.0
        %v612 = vmax.f32 %v580, 0.0
        %v613 = vmax.f32 %v581, 0.0
        %v614 = vmax.f32 %v582, 0.0
        %v615 = vmax.f32 %v583, 0.0
        %v616 = vmax.f32 %v584, 0.0
        %v617 = vmax.f32 %v585, 0.0
        %v618 = vmax.f32 %v586, 0.0
        %v619 = vmax.f32 %v587, 0.0
        %v620 = vmax.f32 %v588, 0.0
        %v621 = vmax.f32 %v589, 0.0
        %v622 = vmax.f32 %v590, 0.0
        %v623 = vmax.f32 %v591, 0.0
        %v624 = vmax.f32 %v592, 0.0
        %v625 = vmax.f32 %v593, 0.0
        %v626 = vmax.f32 %v594, 0.0
        %v627 = vmax.f32 %v595, 0.0
        %v628 = vmax.f32 %v596, 0.0
        %v629 = vmax.f32 %v597, 0.0
        %v630 = vmax.f32 %v598, 0.0
        %v631 = vmax.f32 %v599, 0.0
        %v632 = vmax.f32 %v600, 0.0
        %v633 = vmax.f32 %v601, 0.0
        %v634 = vmax.f32 %v602, 0.0
        %v635 = vmax.f32 %v603, 0.0
        %v636 = vmax.f32 %v604, 0.0
        %v637 = vpack.c.bf16 %v605, %v605
        %v638 = vpack.c.bf16 %v606, %v606
        %v639 = vpack.c.bf16 %v607, %v607
        %v640 = vpack.c.bf16 %v608, %v608
        %v641 = vpack.c.bf16 %v609, %v609
        %v642 = vpack.c.bf16 %v610, %v610
        %v643 = vpack.c.bf16 %v611, %v611
        %v644 = vpack.c.bf16 %v612, %v612
        %v645 = vpack.c.bf16 %v613, %v613
        %v646 = vpack.c.bf16 %v614, %v614
        %v647 = vpack.c.bf16 %v615, %v615
        %v648 = vpack.c.bf16 %v616, %v616
        %v649 = vpack.c.bf16 %v617, %v617
        %v650 = vpack.c.bf16 %v618, %v618
        %v651 = vpack.c.bf16 %v619, %v619
        %v652 = vpack.c.bf16 %v620, %v620
        %v653 = vpack.c.bf16 %v621, %v621
        %v654 = vpack.c.bf16 %v622, %v622
        %v655 = vpack.c.bf16 %v623, %v623
        %v656 = vpack.c.bf16 %v624, %v624
        %v657 = vpack.c.bf16 %v625, %v625
        %v658 = vpack.c.bf16 %v626, %v626
        %v659 = vpack.c.bf16 %v627, %v627
        %v660 = vpack.c.bf16 %v628, %v628
        %v661 = vpack.c.bf16 %v629, %v629
        %v662 = vpack.c.bf16 %v630, %v630
        %v663 = vpack.c.bf16 %v631, %v631
        %v664 = vpack.c.bf16 %v632, %v632
        %v665 = vpack.c.bf16 %v633, %v633
        %v666 = vpack.c.bf16 %v634, %v634
        %v667 = vpack.c.bf16 %v635, %v635
        %v668 = vpack.c.bf16 %v636, %v636
        %669 = vst [vmem:[%s240] sm:$0xf] %v637
        %670 = vst [vmem:[%s240 + $0x4] sm:$0xf] %v638
        %671 = vst [vmem:[%s240 + $0x8] sm:$0xf] %v639
        %672 = vst [vmem:[%s240 + $0xc] sm:$0xf] %v640
        %673 = vst [vmem:[%s240 + $0x10] sm:$0xf] %v641
        %674 = vst [vmem:[%s240 + $0x14] sm:$0xf] %v642
        %675 = vst [vmem:[%s240 + $0x18] sm:$0xf] %v643
        %676 = vst [vmem:[%s240 + $0x1c] sm:$0xf] %v644
        %677 = vst [vmem:[%s240 + $0x20] sm:$0xf] %v645
        %678 = vst [vmem:[%s240 + $0x24] sm:$0xf] %v646
        %679 = vst [vmem:[%s240 + $0x28] sm:$0xf] %v647
        %680 = vst [vmem:[%s240 + $0x2c] sm:$0xf] %v648
        %681 = vst [vmem:[%s240 + $0x30] sm:$0xf] %v649
        %682 = vst [vmem:[%s240 + $0x34] sm:$0xf] %v650
        %683 = vst [vmem:[%s240 + $0x38] sm:$0xf] %v651
        %684 = vst [vmem:[%s240 + $0x3c] sm:$0xf] %v652
        %685 = vst [vmem:[%s240 + $0x40] sm:$0xf] %v653
        %686 = vst [vmem:[%s240 + $0x44] sm:$0xf] %v654
        %687 = vst [vmem:[%s240 + $0x48] sm:$0xf] %v655
        %688 = vst [vmem:[%s240 + $0x4c] sm:$0xf] %v656
        %689 = vst [vmem:[%s240 + $0x50] sm:$0xf] %v657
        %690 = vst [vmem:[%s240 + $0x54] sm:$0xf] %v658
        %691 = vst [vmem:[%s240 + $0x58] sm:$0xf] %v659
        %692 = vst [vmem:[%s240 + $0x5c] sm:$0xf] %v660
        %693 = vst [vmem:[%s240 + $0x60] sm:$0xf] %v661
        %694 = vst [vmem:[%s240 + $0x64] sm:$0xf] %v662
        %695 = vst [vmem:[%s240 + $0x68] sm:$0xf] %v663
        %696 = vst [vmem:[%s240 + $0x6c] sm:$0xf] %v664
        %697 = vst [vmem:[%s240 + $0x70] sm:$0xf] %v665
        %698 = vst [vmem:[%s240 + $0x74] sm:$0xf] %v666
        %699 = vst [vmem:[%s240 + $0x78] sm:$0xf] %v667
        %700 = vst [vmem:[%s240 + $0x7c] sm:$0xf] %v668
        %s701 = sand.u32 %s144, 1
        %s702 = scalar_lea.sflag [#allocation3], %s701
        %s703 = sand.u32 %s144, 1
        %s704 = smul.addr %s703, 128
        %s705 = scalar_lea.vmem [#allocation2], %s704
        // Predicated region
        $region37: #{tpu_custom_call.1} parent=35 // pred_check
          %p706 = pneg %p154
        $region38: #{tpu_custom_call.1} parent=35 // pred_check_branch
          %708 = sbr.rel (%p706) target = $region40
        $region39: #{tpu_custom_call.1} parent=35 // pred_region
          %s709 = smul.u32 32, %s22
          %711 = vsyncadd %s702, 0
          %s712 = sadd.s32 %s23, %s709
          %s713 = smul.addr %s712, 4
          %s714 = scalar_lea.hbm %s4, %s713
          %s715 = sshll.u32 %s705, 4
          %s716 = int_to_ptr.vmem [resolvable:$true] %s715
          %s717 = sshll.u32 %s714, 4
          %s718 = int_to_ptr.hbm [resolvable:$true] %s717
          %723 = dma.vmem_to_hbm [thread:$0]  %s716, 2048, %s718, %s702, 64, 64, 4
        $region40: #{tpu_custom_call.1} parent=35 // pred_fallthru
          _
      $region36: #{tpu_custom_call.1} parent=5 // pred_fallthru
        _
      %p724 = scmp.le.s32.totalorder 2, %s13
      // Predicated region
      $region41: #{tpu_custom_call.1} parent=5 // pred_check
        %p725 = pneg %p724
      $region42: #{tpu_custom_call.1} parent=5 // pred_check_branch
        %727 = sbr.rel (%p725) target = $region44
      $region43: #{tpu_custom_call.1} parent=5 // pred_region
        %s728 = ssub.s32 %s13, 2
        // Predicated region
        $region45: #{tpu_custom_call.1} parent=43 // pred_check
          %p729 = pneg %p160
        $region46: #{tpu_custom_call.1} parent=43 // pred_check_branch
          %731 = sbr.rel (%p729) target = $region48
        $region47: #{tpu_custom_call.1} parent=43 // pred_region
          %s732 = sand.u32 %s145, 1
          %s733 = scalar_lea.sflag [#allocation3], %s732
          %s734 = sand.u32 %s145, 1
          %s735 = smul.addr %s734, 128
          %s736 = scalar_lea.vmem [#allocation2], %s735
          %738 = dma.done %s733, 2048
        $region48: #{tpu_custom_call.1} parent=43 // pred_fallthru
          _
      $region44: #{tpu_custom_call.1} parent=5 // pred_fallthru
        _
    $region6: #{tpu_custom_call.1} parent=1 // loop_footer
      %s17 = sadd.s32 1, %s13
    $region7: #{tpu_custom_call.1} parent=1 // loop_footer_branch
      %12 = sbr.rel target = $region3
    $region8: #{tpu_custom_call.1} parent=1 // loop_exit
      _
    %739 = vsyncpa [#allocation3], 1
    %s740 = scalar_lea.sflag [#allocation3], 1
    %741 = vsyncpa %s740, 1

</llo_original>
